<compile_context>
chip_gen: v7x
topology: tpu7x:2x2x1
jax: 0.10.0
libtpu: 0.0.40
codegen_flags: <defaults>
</compile_context>

<pallas_src>
import jax
import jax.numpy as jnp
from jax.experimental import pallas as pl
from jax.experimental.pallas import tpu as pltpu


# -----------------------------------------------------------------------------
# Pallas kernel: fused OriInvBlock core on lane-dense (B, 2C, h*w) tensors
# -----------------------------------------------------------------------------
def _oriinv_norm_core(x1, x2, a_col, b_col, *, eps):
    """Per batch element (one grid step):
         m  = spatial mean of x1 per channel            (C2, 1)
         s  = population std of x1 per channel          (C2, 1)
         y2 = (x2 - m + beta) / (s * alpha + eps)       (C2, HW)
         y1 = x1 - y2                                   (C2, HW)
    x1, x2: (B, C2, HW) float32; a_col/b_col: (C2, 1) float32.
    """
    B, C2, HW = x1.shape
    inv_n = 1.0 / float(HW)

    def kernel(x1_ref, x2_ref, a_ref, b_ref, y1_ref, y2_ref):
        xa = x1_ref[0]                                          # (C2, HW)
        xb = x2_ref[0]                                          # (C2, HW)
        # Single lane-reduce for mean and variance (flattened spatial on lanes).
        m = jnp.sum(xa, axis=1, keepdims=True) * inv_n          # (C2, 1)
        d = xa - m
        var = jnp.sum(d * d, axis=1, keepdims=True) * inv_n     # (C2, 1)
        s = jnp.sqrt(var)                                       # population std
        y2 = (xb - m + b_ref[...]) / (s * a_ref[...] + eps)     # (C2, HW)
        y1_ref[0] = xa - y2                                     # full-lane stores
        y2_ref[0] = y2

    big = pl.BlockSpec((1, C2, HW), lambda b: (b, 0, 0))
    vec = pl.BlockSpec((C2, 1), lambda b: (0, 0))
    return pl.pallas_call(
        kernel,
        out_shape=(jax.ShapeDtypeStruct((B, C2, HW), jnp.float32),
                   jax.ShapeDtypeStruct((B, C2, HW), jnp.float32)),
        grid=(B,),
        in_specs=[big, big, vec, vec],
        out_specs=(big, big),
        compiler_params=pltpu.CompilerParams(dimension_semantics=("parallel",)),
    )(x1, x2, a_col, b_col)


# -----------------------------------------------------------------------------
# Full OriInvBlock forward (NCHW in / NCHW out, like the PyTorch module)
# -----------------------------------------------------------------------------
@jax.jit
def ori_inv_block_forward(x, alpha, beta):
    """x: (B, C, H, W); alpha, beta: (2C,) parameters."""
    B, C, H, W = x.shape
    h, w = H // 2, W // 2
    C2 = 2 * C
    eps = 1e-08
    x = x.astype(jnp.float32)

    # --- parity unshuffle + channel cat (pure data movement, one XLA fusion) ---
    t = x.reshape(B, C, h, 2, w, 2)
    xs1 = t[:, :, :, 0, :, 0]           # x[:, :, 0::2, 0::2]
    xs2 = t[:, :, :, 1, :, 0]           # x[:, :, 1::2, 0::2]
    xs3 = t[:, :, :, 0, :, 1]           # x[:, :, 0::2, 1::2]
    xs4 = t[:, :, :, 1, :, 1]           # x[:, :, 1::2, 1::2]
    x1 = jnp.concatenate([xs1, xs4], axis=1).reshape(B, C2, h * w)
    x2 = jnp.concatenate([xs2, xs3], axis=1).reshape(B, C2, h * w)

    a_col = alpha.reshape(C2, 1).astype(jnp.float32)
    b_col = beta.reshape(C2, 1).astype(jnp.float32)

    y1, y2 = _oriinv_norm_core(x1, x2, a_col, b_col, eps=eps)

    # --- pixel_shuffle(., 2) on each half + channel cat (pure data movement) ---
    def pixel_shuffle(yf):
        y = yf.reshape(B, C2 // 4, 2, 2, h, w)
        y = jnp.transpose(y, (0, 1, 4, 2, 5, 3))        # (B, C2/4, h, 2, w, 2)
        return y.reshape(B, C2 // 4, H, W)

    return jnp.concatenate([pixel_shuffle(y1), pixel_shuffle(y2)], axis=1)


# -----------------------------------------------------------------------------
# Plain-jnp transcription of the PyTorch forward (self-check only)
# -----------------------------------------------------------------------------
def ori_inv_block_reference(x, alpha, beta):
    eps = 1e-08
    xs1 = x[:, :, 0::2, 0::2]
    xs2 = x[:, :, 1::2, 0::2]
    xs3 = x[:, :, 0::2, 1::2]
    xs4 = x[:, :, 1::2, 1::2]
    x1 = jnp.concatenate([xs1, xs4], axis=1)
    x2 = jnp.concatenate([xs2, xs3], axis=1)
    m = jnp.mean(x1, axis=(2, 3), keepdims=True)
    s = jnp.sqrt(jnp.mean((x1 - m) ** 2, axis=(2, 3), keepdims=True))
    a = alpha.reshape(1, -1, 1, 1)
    b = beta.reshape(1, -1, 1, 1)
    y2 = (x2 - m + b) / (s * a + eps)
    y1 = x1 - y2

    def ps(y):
        Bb, Cc, hh, ww = y.shape
        t = y.reshape(Bb, Cc // 4, 2, 2, hh, ww).transpose(0, 1, 4, 2, 5, 3)
        return t.reshape(Bb, Cc // 4, hh * 2, ww * 2)

    return jnp.concatenate([ps(y1), ps(y2)], axis=1)


if __name__ == "__main__":
    key = jax.random.PRNGKey(0)
    kx, ka, kb = jax.random.split(key, 3)

    # Small shapes consistent with the module: channel_num = C = 8 (nf in TCN-Net),
    # H = W = 32 so the flattened half-res spatial axis (16*16 = 256) is lane-dense.
    B, C, H, W = 2, 8, 32, 32
    x = jax.random.normal(kx, (B, C, H, W), dtype=jnp.float32)
    # nn.Parameter(torch.ones(2C)) / torch.zeros(2C); perturbed so the affine path is
    # actually exercised by the self-check.
    alpha = (1.0 + 0.1 * jax.random.normal(ka, (2 * C,))).astype(jnp.float32)
    beta = (0.1 * jax.random.normal(kb, (2 * C,))).astype(jnp.float32)

    out = ori_inv_block_forward(x, alpha, beta)
    out = jax.block_until_ready(out)

    assert out.shape == (B, C, H, W), out.shape
    assert bool(jnp.all(jnp.isfinite(out))), "non-finite output"

    ref = ori_inv_block_reference(x, alpha, beta)
    err = float(jnp.max(jnp.abs(out - ref)))
    assert err < 1e-4, f"mismatch vs plain-JAX reference: max abs err = {err}"

    print("KERNEL_OK")
</pallas_src>

<mosaic_0001>
module attributes {stable_mosaic.version = 11 : i64} {
  func.func @kernel(%arg0: i32, %arg1: memref<1x16x256xf32, #tpu.memory_space<vmem>>, %arg2: memref<1x16x256xf32, #tpu.memory_space<vmem>>, %arg3: memref<16x1xf32, #tpu.memory_space<vmem>>, %arg4: memref<16x1xf32, #tpu.memory_space<vmem>>, %arg5: memref<1x16x256xf32, #tpu.memory_space<vmem>>, %arg6: memref<1x16x256xf32, #tpu.memory_space<vmem>>) attributes {dimension_semantics = [#tpu.dimension_semantics<parallel>], iteration_bounds = array<i64: 2>, scalar_prefetch = 0 : i64, scratch_operands = 0 : i64, tpu.core_type = #tpu.core_type<tc>, window_params = [{transform_indices = @transform_0, window_bounds = array<i64: 1, 16, 256>}, {transform_indices = @transform_1, window_bounds = array<i64: 1, 16, 256>}, {pipeline_mode = #tpu.pipeline_mode<synchronous>, transform_indices = @transform_2, window_bounds = array<i64: 16, 1>}, {pipeline_mode = #tpu.pipeline_mode<synchronous>, transform_indices = @transform_3, window_bounds = array<i64: 16, 1>}, {transform_indices = @transform_4, window_bounds = array<i64: 1, 16, 256>}, {transform_indices = @transform_5, window_bounds = array<i64: 1, 16, 256>}]} {
    %c0 = arith.constant 0 : index
    %c0_0 = arith.constant 0 : index
    %c0_1 = arith.constant 0 : index
    %0 = vector.load %arg1[%c0, %c0_0, %c0_1] : memref<1x16x256xf32, #tpu.memory_space<vmem>>, vector<1x16x256xf32>
    %1 = vector.shape_cast %0 : vector<1x16x256xf32> to vector<16x256xf32>
    %c0_2 = arith.constant 0 : index
    %c0_3 = arith.constant 0 : index
    %c0_4 = arith.constant 0 : index
    %2 = vector.load %arg2[%c0_2, %c0_3, %c0_4] : memref<1x16x256xf32, #tpu.memory_space<vmem>>, vector<1x16x256xf32>
    %3 = vector.shape_cast %2 : vector<1x16x256xf32> to vector<16x256xf32>
    %cst = arith.constant dense<0.000000e+00> : vector<16xf32>
    %4 = vector.multi_reduction <add>, %1, %cst [1] : vector<16x256xf32> to vector<16xf32>
    %5 = vector.shape_cast %4 : vector<16xf32> to vector<16x1xf32>
    %cst_5 = arith.constant 3.906250e-03 : f32
    %6 = vector.broadcast %cst_5 : f32 to vector<16x1xf32>
    %7 = arith.mulf %5, %6 : vector<16x1xf32>
    %8 = vector.broadcast %7 : vector<16x1xf32> to vector<16x256xf32>
    %9 = arith.subf %1, %8 : vector<16x256xf32>
    %10 = arith.mulf %9, %9 : vector<16x256xf32>
    %cst_6 = arith.constant dense<0.000000e+00> : vector<16xf32>
    %11 = vector.multi_reduction <add>, %10, %cst_6 [1] : vector<16x256xf32> to vector<16xf32>
    %12 = vector.shape_cast %11 : vector<16xf32> to vector<16x1xf32>
    %cst_7 = arith.constant 3.906250e-03 : f32
    %13 = vector.broadcast %cst_7 : f32 to vector<16x1xf32>
    %14 = arith.mulf %12, %13 : vector<16x1xf32>
    %15 = math.sqrt %14 : vector<16x1xf32>
    %16 = vector.broadcast %7 : vector<16x1xf32> to vector<16x256xf32>
    %17 = arith.subf %3, %16 : vector<16x256xf32>
    %c0_8 = arith.constant 0 : index
    %c0_9 = arith.constant 0 : index
    %18 = vector.load %arg4[%c0_8, %c0_9] : memref<16x1xf32, #tpu.memory_space<vmem>>, vector<16x1xf32>
    %19 = vector.broadcast %18 : vector<16x1xf32> to vector<16x256xf32>
    %20 = arith.addf %17, %19 : vector<16x256xf32>
    %c0_10 = arith.constant 0 : index
    %c0_11 = arith.constant 0 : index
    %21 = vector.load %arg3[%c0_10, %c0_11] : memref<16x1xf32, #tpu.memory_space<vmem>>, vector<16x1xf32>
    %22 = arith.mulf %15, %21 : vector<16x1xf32>
    %cst_12 = arith.constant 9.99999993E-9 : f32
    %23 = vector.broadcast %cst_12 : f32 to vector<16x1xf32>
    %24 = arith.addf %22, %23 : vector<16x1xf32>
    %25 = vector.broadcast %24 : vector<16x1xf32> to vector<16x256xf32>
    %26 = arith.divf %20, %25 : vector<16x256xf32>
    %27 = arith.subf %1, %26 : vector<16x256xf32>
    %c0_13 = arith.constant 0 : index
    %c0_14 = arith.constant 0 : index
    %c0_15 = arith.constant 0 : index
    %28 = vector.load %arg5[%c0_13, %c0_14, %c0_15] : memref<1x16x256xf32, #tpu.memory_space<vmem>>, vector<1x16x256xf32>
    %29 = vector.shape_cast %28 : vector<1x16x256xf32> to vector<16x256xf32>
    %30 = vector.shape_cast %27 : vector<16x256xf32> to vector<1x16x256xf32>
    tpu.vector_store %arg5[%c0_13, %c0_14, %c0_15], %30 {strides = array<i32>} : memref<1x16x256xf32, #tpu.memory_space<vmem>>, vector<1x16x256xf32>,
    %c0_16 = arith.constant 0 : index
    %c0_17 = arith.constant 0 : index
    %c0_18 = arith.constant 0 : index
    %31 = vector.load %arg6[%c0_16, %c0_17, %c0_18] : memref<1x16x256xf32, #tpu.memory_space<vmem>>, vector<1x16x256xf32>
    %32 = vector.shape_cast %31 : vector<1x16x256xf32> to vector<16x256xf32>
    %33 = vector.shape_cast %26 : vector<16x256xf32> to vector<1x16x256xf32>
    tpu.vector_store %arg6[%c0_16, %c0_17, %c0_18], %33 {strides = array<i32>} : memref<1x16x256xf32, #tpu.memory_space<vmem>>, vector<1x16x256xf32>,
    return
  }
  func.func @transform_0(%arg0: i32) -> (i32, i32, i32) {
    %c0_i32 = arith.constant 0 : i32
    %c0_i32_0 = arith.constant 0 : i32
    %c0_i32_1 = arith.constant 0 : i32
    return %arg0, %c0_i32, %c0_i32_0 : i32, i32, i32
  }
  func.func @transform_1(%arg0: i32) -> (i32, i32, i32) {
    %c0_i32 = arith.constant 0 : i32
    %c0_i32_0 = arith.constant 0 : i32
    %c0_i32_1 = arith.constant 0 : i32
    return %arg0, %c0_i32, %c0_i32_0 : i32, i32, i32
  }
  func.func @transform_2(%arg0: i32) -> (i32, i32) {
    %c0_i32 = arith.constant 0 : i32
    %c0_i32_0 = arith.constant 0 : i32
    %c0_i32_1 = arith.constant 0 : i32
    return %c0_i32, %c0_i32_0 : i32, i32
  }
  func.func @transform_3(%arg0: i32) -> (i32, i32) {
    %c0_i32 = arith.constant 0 : i32
    %c0_i32_0 = arith.constant 0 : i32
    %c0_i32_1 = arith.constant 0 : i32
    return %c0_i32, %c0_i32_0 : i32, i32
  }
  func.func @transform_4(%arg0: i32) -> (i32, i32, i32) {
    %c0_i32 = arith.constant 0 : i32
    %c0_i32_0 = arith.constant 0 : i32
    %c0_i32_1 = arith.constant 0 : i32
    return %arg0, %c0_i32, %c0_i32_0 : i32, i32, i32
  }
  func.func @transform_5(%arg0: i32) -> (i32, i32, i32) {
    %c0_i32 = arith.constant 0 : i32
    %c0_i32_0 = arith.constant 0 : i32
    %c0_i32_1 = arith.constant 0 : i32
    return %arg0, %c0_i32, %c0_i32_0 : i32, i32, i32
  }
}

</mosaic_0001>

<llo_original>
// kernel: ori_inv_block_forward.1
$region0: #{ori_inv_block_forward.1}
  #allocation0 [shape = 'u32[]', space=smem, size = 0x4, offset = 0x4, fixed_abs, tag = 'smem constant byte address 0x4 - core index']
  #allocation1 [shape = 'u32[144,128]{1,0:T(1,128)}', space=vmem, size = 0x12000, scoped, tag = 'internal scratch']
  %s0 = inlined_call_operand.vmem [shape: f32[2,16,256], index: 0, kind: input, shape index: {}]
  %s1 = inlined_call_operand.vmem [shape: f32[2,16,256], index: 1, kind: input, shape index: {}]
  %s2 = inlined_call_operand.vmem [shape: f32[16,1], index: 2, kind: input, shape index: {}]
  %s3 = inlined_call_operand.vmem [shape: f32[16,1], index: 3, kind: input, shape index: {}]
  %s4 = inlined_call_operand.vmem [shape: f32[2,16,256], index: 4, kind: output, shape index: {0}]
  %s5 = inlined_call_operand.vmem [shape: f32[2,16,256], index: 5, kind: output, shape index: {1}]
  %6 = xla_tuple %s4, %s5
  %s7 = sld [smem:[#allocation0]]
  $region57: #{ori_inv_block_forward.1} parent=0
    _
  %s9 = ssub.s32 1, %s7
  %s10 = scalar_select 0, %s9, %s7
  loop: start=0, step=1, limit=4
  $region2: #{ori_inv_block_forward.1} parent=0 // loop_pre_header
    _
  $region3: #{ori_inv_block_forward.1} parent=0 // loop_header
    %s12 = sphi 0, %s16
    %p13 = scmp.ge.s32.totalorder %s12, 4
    %s22 = sphi 0, %s24
    %s25 = sphi 0, %s22
    %s26 = sphi 0, %s25
    %s42 = sphi 0, %s26
    %s48 = sphi 0, %s50
    %s51 = sphi 0, %s48
    %s52 = sphi 0, %s51
    %s68 = sphi 0, %s52
    %s72 = sphi 0, %s72
    %s74 = sphi 0, %s72
    %s75 = sphi 0, %s74
    %s89 = sphi 0, %s75
    %s93 = sphi 0, %s93
    %s95 = sphi 0, %s93
    %s96 = sphi 0, %s95
    %s110 = sphi 0, %s96
    %s116 = sphi 0, %s118
    %s119 = sphi 0, %s116
    %s120 = sphi 0, %s119
    %s136 = sphi 0, %s120
    %s142 = sphi 0, %s144
    %s145 = sphi 0, %s142
    %s146 = sphi 0, %s145
    %s162 = sphi 0, %s146
  $region4: #{ori_inv_block_forward.1} parent=0 // loop_header_branch
    %15 = sbr.rel (%p13) target = $region8
  $region5: #{ori_inv_block_forward.1} parent=0 // loop_body
    %s17 = ssub.s32 %s12, 1
    %s18 = ssub.s32 %s12, 2
    %s19 = sadd.s32 %s12, 1
    %s20 = ssub.s32 %s12, %s19
    %p21 = scmp.eq.s32.totalorder %s20, 0
    %s23 = sadd.s32 %s22, 1
    %s24 = scalar_select %p21, %s22, %s23
    %p27 = pneg %p21
    %p28 = scmp.eq.s32.totalorder %s12, 1
    %p29 = por %p27, %p28
    %p30 = scmp.ne.s32.totalorder %s22, %s25
    %p31 = scmp.eq.s32.totalorder %s12, 0
    %p32 = por %p30, %p31
    %p33 = scmp.ne.s32.totalorder %s22, %s25
    %p34 = scmp.eq.s32.totalorder %s17, 1
    %p35 = por %p33, %p34
    %p36 = scmp.ne.s32.totalorder %s25, %s26
    %p37 = scmp.eq.s32.totalorder %s17, 0
    %p38 = por %p36, %p37
    %p39 = scmp.ne.s32.totalorder %s25, %s26
    %p40 = scmp.eq.s32.totalorder %s18, 1
    %p41 = por %p39, %p40
    %p43 = scmp.ne.s32.totalorder %s26, %s42
    %p44 = scmp.eq.s32.totalorder %s18, 0
    %p45 = por %p43, %p44
    %s46 = ssub.s32 %s12, %s19
    %p47 = scmp.eq.s32.totalorder %s46, 0
    %s49 = sadd.s32 %s48, 1
    %s50 = scalar_select %p47, %s48, %s49
    %p53 = pneg %p47
    %p54 = scmp.eq.s32.totalorder %s12, 1
    %p55 = por %p53, %p54
    %p56 = scmp.ne.s32.totalorder %s48, %s51
    %p57 = scmp.eq.s32.totalorder %s12, 0
    %p58 = por %p56, %p57
    %p59 = scmp.ne.s32.totalorder %s48, %s51
    %p60 = scmp.eq.s32.totalorder %s17, 1
    %p61 = por %p59, %p60
    %p62 = scmp.ne.s32.totalorder %s51, %s52
    %p63 = scmp.eq.s32.totalorder %s17, 0
    %p64 = por %p62, %p63
    %p65 = scmp.ne.s32.totalorder %s51, %s52
    %p66 = scmp.eq.s32.totalorder %s18, 1
    %p67 = por %p65, %p66
    %p69 = scmp.ne.s32.totalorder %s52, %s68
    %p70 = scmp.eq.s32.totalorder %s18, 0
    %p71 = por %p69, %p70
    %s73 = sadd.s32 %s72, 1
    %p76 = scmp.eq.s32.totalorder %s12, 1
    %p77 = scmp.ne.s32.totalorder %s72, %s74
    %p78 = scmp.eq.s32.totalorder %s12, 0
    %p79 = por %p77, %p78
    %p80 = scmp.ne.s32.totalorder %s72, %s74
    %p81 = scmp.eq.s32.totalorder %s17, 1
    %p82 = por %p80, %p81
    %p83 = scmp.ne.s32.totalorder %s74, %s75
    %p84 = scmp.eq.s32.totalorder %s17, 0
    %p85 = por %p83, %p84
    %p86 = scmp.ne.s32.totalorder %s74, %s75
    %p87 = scmp.eq.s32.totalorder %s18, 1
    %p88 = por %p86, %p87
    %p90 = scmp.ne.s32.totalorder %s75, %s89
    %p91 = scmp.eq.s32.totalorder %s18, 0
    %p92 = por %p90, %p91
    %s94 = sadd.s32 %s93, 1
    %p97 = scmp.eq.s32.totalorder %s12, 1
    %p98 = scmp.ne.s32.totalorder %s93, %s95
    %p99 = scmp.eq.s32.totalorder %s12, 0
    %p100 = por %p98, %p99
    %p101 = scmp.ne.s32.totalorder %s93, %s95
    %p102 = scmp.eq.s32.totalorder %s17, 1
    %p103 = por %p101, %p102
    %p104 = scmp.ne.s32.totalorder %s95, %s96
    %p105 = scmp.eq.s32.totalorder %s17, 0
    %p106 = por %p104, %p105
    %p107 = scmp.ne.s32.totalorder %s95, %s96
    %p108 = scmp.eq.s32.totalorder %s18, 1
    %p109 = por %p107, %p108
    %p111 = scmp.ne.s32.totalorder %s96, %s110
    %p112 = scmp.eq.s32.totalorder %s18, 0
    %p113 = por %p111, %p112
    %s114 = ssub.s32 %s12, %s19
    %p115 = scmp.eq.s32.totalorder %s114, 0
    %s117 = sadd.s32 %s116, 1
    %s118 = scalar_select %p115, %s116, %s117
    %p121 = pneg %p115
    %p122 = scmp.eq.s32.totalorder %s12, 1
    %p123 = por %p121, %p122
    %p124 = scmp.ne.s32.totalorder %s116, %s119
    %p125 = scmp.eq.s32.totalorder %s12, 0
    %p126 = por %p124, %p125
    %p127 = scmp.ne.s32.totalorder %s116, %s119
    %p128 = scmp.eq.s32.totalorder %s17, 1
    %p129 = por %p127, %p128
    %p130 = scmp.ne.s32.totalorder %s119, %s120
    %p131 = scmp.eq.s32.totalorder %s17, 0
    %p132 = por %p130, %p131
    %p133 = scmp.ne.s32.totalorder %s119, %s120
    %p134 = scmp.eq.s32.totalorder %s18, 1
    %p135 = por %p133, %p134
    %p137 = scmp.ne.s32.totalorder %s120, %s136
    %p138 = scmp.eq.s32.totalorder %s18, 0
    %p139 = por %p137, %p138
    %s140 = ssub.s32 %s12, %s19
    %p141 = scmp.eq.s32.totalorder %s140, 0
    %s143 = sadd.s32 %s142, 1
    %s144 = scalar_select %p141, %s142, %s143
    %p147 = pneg %p141
    %p148 = scmp.eq.s32.totalorder %s12, 1
    %p149 = por %p147, %p148
    %p150 = scmp.ne.s32.totalorder %s142, %s145
    %p151 = scmp.eq.s32.totalorder %s12, 0
    %p152 = por %p150, %p151
    %p153 = scmp.ne.s32.totalorder %s142, %s145
    %p154 = scmp.eq.s32.totalorder %s17, 1
    %p155 = por %p153, %p154
    %p156 = scmp.ne.s32.totalorder %s145, %s146
    %p157 = scmp.eq.s32.totalorder %s17, 0
    %p158 = por %p156, %p157
    %p159 = scmp.ne.s32.totalorder %s145, %s146
    %p160 = scmp.eq.s32.totalorder %s18, 1
    %p161 = por %p159, %p160
    %p163 = scmp.ne.s32.totalorder %s146, %s162
    %p164 = scmp.eq.s32.totalorder %s18, 0
    %p165 = por %p163, %p164
    %p166 = scmp.le.s32.totalorder 1, %s12
    %p167 = scmp.lt.s32.totalorder %s12, 3
    %p168 = pnand %p166, %p167
    %p169 = pneg %p168
    // Predicated region
    $region9: #{ori_inv_block_forward.1} parent=5 // pred_check
      _
    $region10: #{ori_inv_block_forward.1} parent=5 // pred_check_branch
      %171 = sbr.rel (%p168) target = $region12
    $region11: #{ori_inv_block_forward.1} parent=5 // pred_region
      %s172 = ssub.s32 %s12, 1
      // Predicated region
      $region13: #{ori_inv_block_forward.1} parent=11 // pred_check
        %p173 = pneg %p85
      $region14: #{ori_inv_block_forward.1} parent=11 // pred_check_branch
        %175 = sbr.rel (%p173) target = $region16
      $region15: #{ori_inv_block_forward.1} parent=11 // pred_region
        _
      $region16: #{ori_inv_block_forward.1} parent=11 // pred_fallthru
        _
      // Predicated region
      $region17: #{ori_inv_block_forward.1} parent=11 // pred_check
        %p176 = pneg %p106
      $region18: #{ori_inv_block_forward.1} parent=11 // pred_check_branch
        %178 = sbr.rel (%p176) target = $region20
      $region19: #{ori_inv_block_forward.1} parent=11 // pred_region
        _
      $region20: #{ori_inv_block_forward.1} parent=11 // pred_fallthru
        _
    $region12: #{ori_inv_block_forward.1} parent=5 // pred_fallthru
      _
    %p179 = scmp.lt.s32.totalorder %s12, 2
    // Predicated region
    $region21: #{ori_inv_block_forward.1} parent=5 // pred_check
      %p180 = pneg %p179
    $region22: #{ori_inv_block_forward.1} parent=5 // pred_check_branch
      %182 = sbr.rel (%p180) target = $region24
    $region23: #{ori_inv_block_forward.1} parent=5 // pred_region
      // Predicated region
      $region25: #{ori_inv_block_forward.1} parent=23 // pred_check
        %p183 = pneg %p32
      $region26: #{ori_inv_block_forward.1} parent=23 // pred_check_branch
        %185 = sbr.rel (%p183) target = $region28
      $region27: #{ori_inv_block_forward.1} parent=23 // pred_region
        %p186 = scmp.lt.s32.totalorder %s12, 1
        %s187 = scalar_select %p186, %s12, 1
        %s188 = smul.addr %s187, 4
        %s189 = smul.addr %s188, 8
        %s190 = scalar_lea.vmem %s0, %s189
      $region28: #{ori_inv_block_forward.1} parent=23 // pred_fallthru
        _
      // Predicated region
      $region29: #{ori_inv_block_forward.1} parent=23 // pred_check
        %p191 = pneg %p58
      $region30: #{ori_inv_block_forward.1} parent=23 // pred_check_branch
        %193 = sbr.rel (%p191) target = $region32
      $region31: #{ori_inv_block_forward.1} parent=23 // pred_region
        %p194 = scmp.lt.s32.totalorder %s12, 1
        %s195 = scalar_select %p194, %s12, 1
        %s196 = smul.addr %s195, 4
        %s197 = smul.addr %s196, 8
        %s198 = scalar_lea.vmem %s1, %s197
      $region32: #{ori_inv_block_forward.1} parent=23 // pred_fallthru
        _
    $region24: #{ori_inv_block_forward.1} parent=5 // pred_fallthru
      _
    %p199 = scmp.le.s32.totalorder 1, %s12
    %p200 = scmp.lt.s32.totalorder %s12, 3
    %p201 = pnand %p199, %p200
    %p202 = pneg %p201
    // Predicated region
    $region33: #{ori_inv_block_forward.1} parent=5 // pred_check
      _
    $region34: #{ori_inv_block_forward.1} parent=5 // pred_check_branch
      %204 = sbr.rel (%p201) target = $region36
    $region35: #{ori_inv_block_forward.1} parent=5 // pred_region
      %s205 = ssub.s32 %s12, 1
      %p206 = scmp.lt.s32.totalorder %s17, 1
      %s207 = scalar_select %p206, %s17, 1
      %s208 = smul.addr %s207, 4
      %s209 = smul.addr %s208, 8
      %s210 = scalar_lea.vmem %s0, %s209
      %p211 = pneg %p38
      %p212 = pneg %p35
      %p213 = scmp.lt.s32.totalorder %s17, 1
      %s214 = scalar_select %p213, %s17, 1
      %s215 = smul.addr %s214, 4
      %s216 = smul.addr %s215, 8
      %s217 = scalar_lea.vmem %s1, %s216
      %p218 = pneg %p64
      %p219 = pneg %p61
      %p220 = pneg %p85
      %p221 = pneg %p82
      %p222 = pneg %p106
      %p223 = pneg %p103
      %p224 = pneg %p132
      %p225 = pneg %p129
      %p226 = scmp.lt.s32.totalorder %s17, 1
      %s227 = scalar_select %p226, %s17, 1
      %s228 = smul.addr %s227, 4
      %s229 = smul.addr %s228, 8
      %s230 = scalar_lea.vmem %s4, %s229
      %p231 = pneg %p158
      %p232 = pneg %p155
      %p233 = scmp.lt.s32.totalorder %s17, 1
      %s234 = scalar_select %p233, %s17, 1
      %s235 = smul.addr %s234, 4
      %s236 = smul.addr %s235, 8
      %s237 = scalar_lea.vmem %s5, %s236
      %p238 = scmp.lt.s32.totalorder %s17, 1
      %s239 = scalar_select %p238, %s17, 1
      %s240 = smul.addr %s239, 4
      %s241 = smul.addr %s240, 8
      %s242 = scalar_lea.vmem %s0, %s241
      %p243 = scmp.lt.s32.totalorder %s17, 1
      %s244 = scalar_select %p243, %s17, 1
      %s245 = smul.addr %s244, 4
      %s246 = smul.addr %s245, 8
      %s247 = scalar_lea.vmem %s1, %s246
      %p248 = scmp.lt.s32.totalorder %s17, 1
      %s249 = scalar_select %p248, %s17, 1
      %s250 = smul.addr %s249, 4
      %s251 = smul.addr %s250, 8
      %s252 = scalar_lea.vmem %s4, %s251
      %p253 = scmp.lt.s32.totalorder %s17, 1
      %s254 = scalar_select %p253, %s17, 1
      %s255 = smul.addr %s254, 4
      %s256 = smul.addr %s255, 8
      %s257 = scalar_lea.vmem %s5, %s256
      %v258 = vld [vmem:[%s242] sm:$0xff]
      %v259 = vld [vmem:[%s242 + $0x8] sm:$0xff]
      %v260 = vld [vmem:[%s242 + $0x10] sm:$0xff]
      %v261 = vld [vmem:[%s242 + $0x18] sm:$0xff]
      %v262 = vld [vmem:[%s247] sm:$0xff]
      %v263 = vld [vmem:[%s247 + $0x8] sm:$0xff]
      %v264 = vld [vmem:[%s247 + $0x10] sm:$0xff]
      %v265 = vld [vmem:[%s247 + $0x18] sm:$0xff]
      %v266 = vadd.f32 %v258, %v259
      %267 = vadd.xlane.f32.xlu0 %v266
      %v268 = vpop.xlane.xlu0 %267
      %v269 = vadd.f32 %v260, %v261
      %270 = vadd.xlane.f32.xlu0 %v269
      %v271 = vpop.xlane.xlu0 %270
      %v272 = vmul.f32 %v268, 0.00390625
      %v273 = vmul.f32 %v271, 0.00390625
      %v274 = vsub.f32 %v258, %v272
      %v275 = vsub.f32 %v259, %v272
      %v276 = vsub.f32 %v260, %v273
      %v277 = vsub.f32 %v261, %v273
      %v278 = vmul.f32 %v274, %v274
      %v279 = vmul.f32 %v275, %v275
      %v280 = vmul.f32 %v276, %v276
      %v281 = vmul.f32 %v277, %v277
      %v282 = vadd.f32 %v278, %v279
      %283 = vadd.xlane.f32.xlu0 %v282
      %v284 = vpop.xlane.xlu0 %283
      %v285 = vadd.f32 %v280, %v281
      %286 = vadd.xlane.f32.xlu0 %v285
      %v287 = vpop.xlane.xlu0 %286
      %v288 = vmul.f32 %v284, 0.00390625
      %v289 = vmul.f32 %v287, 0.00390625
      %v290 = vrsqrt.pop %v288
      %v291 = vmul.f32 %v288, %v290
      %vm292 = vcmp.eq.f32.partialorder %v288, inf
      %v293 = vsel %vm292, %v288, %v291
      %vm294 = vcmp.eq.f32.partialorder %v288, 0.0
      %v295 = vand.u32 %v288, 2147483648
      %v296 = vsel %vm294, %v295, %v293
      %v297 = vrsqrt.pop %v289
      %v298 = vmul.f32 %v289, %v297
      %vm299 = vcmp.eq.f32.partialorder %v289, inf
      %v300 = vsel %vm299, %v289, %v298
      %vm301 = vcmp.eq.f32.partialorder %v289, 0.0
      %v302 = vand.u32 %v289, 2147483648
      %v303 = vsel %vm301, %v302, %v300
      %v304 = vsub.f32 %v262, %v272
      %v305 = vsub.f32 %v263, %v272
      %v306 = vsub.f32 %v264, %v273
      %v307 = vsub.f32 %v265, %v273
      %v308 = vld [vmem:[%s3] sm:$0xff]
      %v309 = vld [vmem:[%s3 + $0x8] sm:$0xff]
      %311 = vset.pattern.permute.xlu0 0
      %312 = vperm.xlu0 %311, %v308
      %v313 = vpop.permute.xlu0 %312
      %316 = vset.pattern.permute.xlu0 0
      %317 = vperm.xlu0 %316, %v309
      %v318 = vpop.permute.xlu0 %317
      %v320 = vadd.f32 %v304, %v313
      %v321 = vadd.f32 %v305, %v313
      %v322 = vadd.f32 %v306, %v318
      %v323 = vadd.f32 %v307, %v318
      %v324 = vld [vmem:[%s2] sm:$0xff]
      %v325 = vld [vmem:[%s2 + $0x8] sm:$0xff]
      %v326 = vmul.f32 %v296, %v324
      %v327 = vmul.f32 %v303, %v325
      %v328 = vadd.f32 %v326, 1e-08
      %v329 = vadd.f32 %v327, 1e-08
      %331 = vset.pattern.permute.xlu0 0
      %332 = vperm.xlu0 %331, %v328
      %v333 = vpop.permute.xlu0 %332
      %336 = vset.pattern.permute.xlu0 0
      %337 = vperm.xlu0 %336, %v329
      %v338 = vpop.permute.xlu0 %337
      %v340 = vrcp.pop %v333
      %v341 = vmul.f32 %v320, %v340
      %v342 = vmul.f32 %v321, %v340
      %v343 = vrcp.pop %v338
      %v344 = vmul.f32 %v322, %v343
      %v345 = vmul.f32 %v323, %v343
      %v346 = vsub.f32 %v258, %v341
      %v347 = vsub.f32 %v259, %v342
      %v348 = vsub.f32 %v260, %v344
      %v349 = vsub.f32 %v261, %v345
      %350 = vst [vmem:[%s252] sm:$0xff] %v346
      %351 = vst [vmem:[%s252 + $0x8] sm:$0xff] %v347
      %352 = vst [vmem:[%s252 + $0x10] sm:$0xff] %v348
      %353 = vst [vmem:[%s252 + $0x18] sm:$0xff] %v349
      %354 = vst [vmem:[%s257] sm:$0xff] %v341
      %355 = vst [vmem:[%s257 + $0x8] sm:$0xff] %v342
      %356 = vst [vmem:[%s257 + $0x10] sm:$0xff] %v344
      %357 = vst [vmem:[%s257 + $0x18] sm:$0xff] %v345
      %p358 = scmp.lt.s32.totalorder %s17, 1
      %s359 = scalar_select %p358, %s17, 1
      %s360 = smul.addr %s359, 4
      %s361 = smul.addr %s360, 8
      %s362 = scalar_lea.vmem %s4, %s361
      %p363 = scmp.lt.s32.totalorder %s17, 1
      %s364 = scalar_select %p363, %s17, 1
      %s365 = smul.addr %s364, 4
      %s366 = smul.addr %s365, 8
      %s367 = scalar_lea.vmem %s5, %s366
      // Predicated region
      $region37: #{ori_inv_block_forward.1} parent=35 // pred_check
        %p368 = pneg %p129
      $region38: #{ori_inv_block_forward.1} parent=35 // pred_check_branch
        %370 = sbr.rel (%p368) target = $region40
      $region39: #{ori_inv_block_forward.1} parent=35 // pred_region
        _
      $region40: #{ori_inv_block_forward.1} parent=35 // pred_fallthru
        _
      // Predicated region
      $region41: #{ori_inv_block_forward.1} parent=35 // pred_check
        %p371 = pneg %p155
      $region42: #{ori_inv_block_forward.1} parent=35 // pred_check_branch
        %373 = sbr.rel (%p371) target = $region44
      $region43: #{ori_inv_block_forward.1} parent=35 // pred_region
        _
      $region44: #{ori_inv_block_forward.1} parent=35 // pred_fallthru
        _
    $region36: #{ori_inv_block_forward.1} parent=5 // pred_fallthru
      _
    %p374 = scmp.le.s32.totalorder 2, %s12
    // Predicated region
    $region45: #{ori_inv_block_forward.1} parent=5 // pred_check
      %p375 = pneg %p374
    $region46: #{ori_inv_block_forward.1} parent=5 // pred_check_branch
      %377 = sbr.rel (%p375) target = $region48
    $region47: #{ori_inv_block_forward.1} parent=5 // pred_region
      %s378 = ssub.s32 %s12, 2
      // Predicated region
      $region49: #{ori_inv_block_forward.1} parent=47 // pred_check
        %p379 = pneg %p135
      $region50: #{ori_inv_block_forward.1} parent=47 // pred_check_branch
        %381 = sbr.rel (%p379) target = $region52
      $region51: #{ori_inv_block_forward.1} parent=47 // pred_region
        %p382 = scmp.lt.s32.totalorder %s18, 1
        %s383 = scalar_select %p382, %s18, 1
        %s384 = smul.addr %s383, 4
        %s385 = smul.addr %s384, 8
        %s386 = scalar_lea.vmem %s4, %s385
      $region52: #{ori_inv_block_forward.1} parent=47 // pred_fallthru
        _
      // Predicated region
      $region53: #{ori_inv_block_forward.1} parent=47 // pred_check
        %p387 = pneg %p161
      $region54: #{ori_inv_block_forward.1} parent=47 // pred_check_branch
        %389 = sbr.rel (%p387) target = $region56
      $region55: #{ori_inv_block_forward.1} parent=47 // pred_region
        %p390 = scmp.lt.s32.totalorder %s18, 1
        %s391 = scalar_select %p390, %s18, 1
        %s392 = smul.addr %s391, 4
        %s393 = smul.addr %s392, 8
        %s394 = scalar_lea.vmem %s5, %s393
      $region56: #{ori_inv_block_forward.1} parent=47 // pred_fallthru
        _
    $region48: #{ori_inv_block_forward.1} parent=5 // pred_fallthru
      _
  $region6: #{ori_inv_block_forward.1} parent=0 // loop_footer
    %s16 = sadd.s32 1, %s12
  $region7: #{ori_inv_block_forward.1} parent=0 // loop_footer_branch
    %11 = sbr.rel target = $region3
  $region8: #{ori_inv_block_forward.1} parent=0 // loop_exit
    _

</llo_original>
